<compile_context>
chip_gen: v7x
topology: tpu7x:2x2x1
jax: 0.10.0
libtpu: 0.0.40
codegen_flags: <defaults>
</compile_context>

<pallas_src>
import jax
import jax.numpy as jnp
from jax import lax
from jax.experimental import pallas as pl
from jax.experimental.pallas import tpu as pltpu
import numpy as np


# ---------------------------------------------------------------------------
# Kernels
# ---------------------------------------------------------------------------
_DN_LAST_LAST = (((1,), (1,)), ((), ()))  # contract last dim of x with last dim of w


def _noisy_kernel_accum_out(x_ref, xn_ref, mu_w_ref, sigma_w_ref,
                            eps_j_ref, b_ref, o_ref):
    """f32-output path: accumulate directly into the resident output block."""
    k = pl.program_id(2)

    @pl.when(k == 0)
    def _():
        o_ref[...] = jnp.zeros_like(o_ref)

    part = lax.dot_general(x_ref[...], mu_w_ref[...],
                           dimension_numbers=_DN_LAST_LAST,
                           preferred_element_type=jnp.float32)
    part = part + lax.dot_general(xn_ref[...], sigma_w_ref[...],
                                  dimension_numbers=_DN_LAST_LAST,
                                  preferred_element_type=jnp.float32) * eps_j_ref[...]
    o_ref[...] += part

    @pl.when(k == pl.num_programs(2) - 1)
    def _():
        o_ref[...] += b_ref[...]


def _noisy_kernel_scratch(x_ref, xn_ref, mu_w_ref, sigma_w_ref,
                          eps_j_ref, b_ref, o_ref, acc_ref):
    """Non-f32-output path: single f32 scratch accumulator, cast at the end."""
    k = pl.program_id(2)

    @pl.when(k == 0)
    def _():
        acc_ref[...] = jnp.zeros_like(acc_ref)

    acc_ref[...] += (
        lax.dot_general(x_ref[...], mu_w_ref[...],
                        dimension_numbers=_DN_LAST_LAST,
                        preferred_element_type=jnp.float32)
        + lax.dot_general(xn_ref[...], sigma_w_ref[...],
                          dimension_numbers=_DN_LAST_LAST,
                          preferred_element_type=jnp.float32) * eps_j_ref[...])

    @pl.when(k == pl.num_programs(2) - 1)
    def _():
        o_ref[...] = (acc_ref[...] + b_ref[...]).astype(o_ref.dtype)


# ---------------------------------------------------------------------------
# Wrapper
# ---------------------------------------------------------------------------
def _round_up(x, m):
    return ((x + m - 1) // m) * m


def _pad2d(a, rows, cols):
    pr, pc = rows - a.shape[0], cols - a.shape[1]
    if pr or pc:
        a = jnp.pad(a, ((0, pr), (0, pc)))
    return a


def noisy_linear(x, mu_w, sigma_w, eps_i, eps_j, mu_b, sigma_b, eps_b,
                 *, tm=256, tn=1024, tk=1024, weights_dtype=None,
                 out_dtype=None):
    """y = x @ (mu_w + sigma_w * outer(eps_j, eps_i)).T + (mu_b + sigma_b*eps_b)."""
    B, K = x.shape
    N = mu_w.shape[0]
    out_dtype = x.dtype if out_dtype is None else out_dtype

    # Fold bias and the rank-1 input-noise scaling once in plain JAX
    # (tiny [N] / [B,K] ops) -> kernel never redoes them per grid step.
    b_eff = (mu_b + sigma_b * eps_b).astype(jnp.float32).reshape(1, N)
    x_noisy = x * eps_i.reshape(1, K)

    # Tile sizes, clamped to the (aligned) problem size.  Defaults are sized
    # for the HBM-bound weight-streaming regime: tn/tk up to 1024 (multiple of
    # 256 for the v6e/v7x MXU), tm up to 256.  VMEM: 2 weight streams x 2
    # pipeline buffers x 4 MiB + x/x_noisy/out tiles ~= 22 MiB, inside the
    # 48 MiB limit and v7x's 64 MiB physical VMEM.
    N128 = _round_up(N, 128)
    K128 = _round_up(K, 128)
    tm = min(tm, _round_up(B, 8))
    tn = min(tn, N128)
    tk = min(tk, K128)

    # If the M axis has only one block, split N into >=2 blocks so both v7x
    # TensorCores get work (harmless single extra grid step on v5e/v6e).
    if B <= tm and tn >= N128 and N128 >= 256 and N128 % 256 == 0:
        tn = N128 // 2

    Bp, Np, Kp = _round_up(B, tm), _round_up(N, tn), _round_up(K, tk)

    x_p = _pad2d(x, Bp, Kp)
    xn_p = _pad2d(x_noisy, Bp, Kp)
    mu_w_p = _pad2d(mu_w, Np, Kp)
    sigma_w_p = _pad2d(sigma_w, Np, Kp)
    eps_j_p = _pad2d(eps_j.astype(jnp.float32).reshape(1, N), 1, Np)
    b_p = _pad2d(b_eff, 1, Np)

    if weights_dtype is not None:
        # Halve the dominant weight-stream HBM traffic; f32 MXU accumulation
        # keeps precision.  Elementwise work stays f32.
        x_p = x_p.astype(weights_dtype)
        xn_p = xn_p.astype(weights_dtype)
        mu_w_p = mu_w_p.astype(weights_dtype)
        sigma_w_p = sigma_w_p.astype(weights_dtype)

    grid = (Bp // tm, Np // tn, Kp // tk)

    if np.dtype(out_dtype) == np.dtype(jnp.float32):
        kernel = _noisy_kernel_accum_out
        scratch_shapes = []
    else:
        kernel = _noisy_kernel_scratch
        scratch_shapes = [pltpu.VMEM((tm, tn), jnp.float32)]

    out = pl.pallas_call(
        kernel,
        out_shape=jax.ShapeDtypeStruct((Bp, Np), out_dtype),
        grid_spec=pltpu.PrefetchScalarGridSpec(
            num_scalar_prefetch=0,
            grid=grid,
            in_specs=[
                pl.BlockSpec((tm, tk), lambda i, j, k: (i, k)),   # x
                pl.BlockSpec((tm, tk), lambda i, j, k: (i, k)),   # x * eps_i
                pl.BlockSpec((tn, tk), lambda i, j, k: (j, k)),   # mu_w
                pl.BlockSpec((tn, tk), lambda i, j, k: (j, k)),   # sigma_w
                pl.BlockSpec((1, tn), lambda i, j, k: (0, j)),    # eps_j row
                pl.BlockSpec((1, tn), lambda i, j, k: (0, j)),    # bias row
            ],
            out_specs=pl.BlockSpec((tm, tn), lambda i, j, k: (i, j)),
            scratch_shapes=scratch_shapes,
        ),
        compiler_params=pltpu.CompilerParams(
            dimension_semantics=("parallel", "parallel", "arbitrary"),
            vmem_limit_bytes=48 * 1024 * 1024,
        ),
    )(x_p, xn_p, mu_w_p, sigma_w_p, eps_j_p, b_p)

    return out[:B, :N]


# ---------------------------------------------------------------------------
# Parameter / noise setup (plain JAX glue, mirrors the PyTorch __init__ +
# reset_noise).  Returns the factorized noise vectors (eps_i, eps_j) — the
# full weight_epsilon matrix is never needed by the kernel.
# ---------------------------------------------------------------------------
def f_noise(x):
    # PyTorch: sign(x) * sqrt(|x|)
    return jnp.sign(x) * jnp.sqrt(jnp.abs(x))


def init_noisy_layer_params(key, n_inputs, n_outputs):
    k_mu_w, k_mu_b, k_eps_i, k_eps_j = jax.random.split(key, 4)
    bound = 1.0 / np.sqrt(n_inputs)
    mu_w = jax.random.uniform(k_mu_w, (n_outputs, n_inputs),
                              minval=-bound, maxval=bound, dtype=jnp.float32)
    sigma_w = jnp.full((n_outputs, n_inputs), 0.1 / np.sqrt(n_inputs), jnp.float32)
    mu_b = jax.random.uniform(k_mu_b, (n_outputs,),
                              minval=-bound, maxval=bound, dtype=jnp.float32)
    sigma_b = jnp.full((n_outputs,), 0.1 / np.sqrt(n_outputs), jnp.float32)
    # reset_noise(): factorized Gaussian noise (rank-1)
    eps_i = f_noise(jax.random.normal(k_eps_i, (n_inputs,), jnp.float32))
    eps_j = f_noise(jax.random.normal(k_eps_j, (n_outputs,), jnp.float32))
    return mu_w, sigma_w, mu_b, sigma_b, eps_i, eps_j


def _reference(x, mu_w, sigma_w, mu_b, sigma_b, eps_i, eps_j):
    weight_epsilon = jnp.outer(eps_j, eps_i)          # [n_out, n_in]
    w_eff = mu_w + sigma_w * weight_epsilon
    b_eff = mu_b + sigma_b * eps_j                    # bias_epsilon = eps_j
    return x @ w_eff.T + b_eff


if __name__ == "__main__":
    key = jax.random.PRNGKey(0)
    k_param, k_x, k_param2, k_x2 = jax.random.split(key, 4)

    # ---- Test 1: module-sized demo (small shapes, single grid step) --------
    batch, n_inputs, n_outputs = 8, 32, 64
    mu_w, sigma_w, mu_b, sigma_b, eps_i, eps_j = init_noisy_layer_params(
        k_param, n_inputs, n_outputs)
    x = jax.random.normal(k_x, (batch, n_inputs), jnp.float32)

    out = noisy_linear(x, mu_w, sigma_w, eps_i, eps_j, mu_b, sigma_b, eps_j)
    out = jax.block_until_ready(out)
    ref = _reference(x, mu_w, sigma_w, mu_b, sigma_b, eps_i, eps_j)
    np.testing.assert_allclose(np.asarray(out), np.asarray(ref),
                               rtol=1e-5, atol=1e-5)

    # ---- Test 2: multi-tile grid (exercises K-accumulation / M,N tiling) ---
    B2, K2, N2 = 256, 384, 512
    mu_w2, sigma_w2, mu_b2, sigma_b2, eps_i2, eps_j2 = init_noisy_layer_params(
        k_param2, K2, N2)
    x2 = jax.random.normal(k_x2, (B2, K2), jnp.float32)

    out2 = noisy_linear(x2, mu_w2, sigma_w2, eps_i2, eps_j2,
                        mu_b2, sigma_b2, eps_j2, tm=128, tn=128, tk=128)
    out2 = jax.block_until_ready(out2)
    ref2 = _reference(x2, mu_w2, sigma_w2, mu_b2, sigma_b2, eps_i2, eps_j2)
    np.testing.assert_allclose(np.asarray(out2), np.asarray(ref2),
                               rtol=1e-4, atol=1e-4)

    print("KERNEL_OK")
</pallas_src>

<mosaic_0001>
module attributes {stable_mosaic.version = 11 : i64} {
  func.func @_noisy_kernel_accum_out(%arg0: i32, %arg1: i32, %arg2: i32, %arg3: memref<8x128xf32, #tpu.memory_space<vmem>>, %arg4: memref<8x128xf32, #tpu.memory_space<vmem>>, %arg5: memref<128x128xf32, #tpu.memory_space<vmem>>, %arg6: memref<128x128xf32, #tpu.memory_space<vmem>>, %arg7: memref<1x128xf32, #tpu.memory_space<vmem>>, %arg8: memref<1x128xf32, #tpu.memory_space<vmem>>, %arg9: memref<8x128xf32, #tpu.memory_space<vmem>>) attributes {dimension_semantics = [#tpu.dimension_semantics<parallel>, #tpu.dimension_semantics<parallel>, #tpu.dimension_semantics<arbitrary>], iteration_bounds = array<i64: 1, 1, 1>, scalar_prefetch = 0 : i64, scratch_operands = 0 : i64, tpu.core_type = #tpu.core_type<tc>, window_params = [{transform_indices = @transform_0, window_bounds = array<i64: 8, 128>}, {transform_indices = @transform_1, window_bounds = array<i64: 8, 128>}, {transform_indices = @transform_2, window_bounds = array<i64: 128, 128>}, {transform_indices = @transform_3, window_bounds = array<i64: 128, 128>}, {transform_indices = @transform_4, window_bounds = array<i64: 1, 128>}, {transform_indices = @transform_5, window_bounds = array<i64: 1, 128>}, {transform_indices = @transform_6, window_bounds = array<i64: 8, 128>}]} {
    %c0_i32 = arith.constant 0 : i32
    %0 = arith.cmpi eq, %arg2, %c0_i32 : i32
    %1 = arith.extui %0 : i1 to i32
    %c0_i32_0 = arith.constant 0 : i32
    %2 = arith.cmpi ne, %1, %c0_i32_0 : i32
    scf.if %2 {
      %cst_17 = arith.constant 0.000000e+00 : f32
      %19 = vector.broadcast %cst_17 : f32 to vector<8x128xf32>
      %c0_18 = arith.constant 0 : index
      %c0_19 = arith.constant 0 : index
      %20 = vector.load %arg9[%c0_18, %c0_19] : memref<8x128xf32, #tpu.memory_space<vmem>>, vector<8x128xf32>
      tpu.vector_store %arg9[%c0_18, %c0_19], %19 {strides = array<i32>} : memref<8x128xf32, #tpu.memory_space<vmem>>, vector<8x128xf32>,
    } else {
    }
    %c0 = arith.constant 0 : index
    %c0_1 = arith.constant 0 : index
    %3 = vector.load %arg3[%c0, %c0_1] : memref<8x128xf32, #tpu.memory_space<vmem>>, vector<8x128xf32>
    %c0_2 = arith.constant 0 : index
    %c0_3 = arith.constant 0 : index
    %4 = vector.load %arg5[%c0_2, %c0_3] : memref<128x128xf32, #tpu.memory_space<vmem>>, vector<128x128xf32>
    %cst = arith.constant dense<0.000000e+00> : vector<8x128xf32>
    %5 = tpu.matmul %3, %4, %cst {dimension_numbers = #tpu.dot_dimension_numbers<[1], [1], [0], [0], [0, 0, 1, 0], [], []>} : vector<8x128xf32>, vector<128x128xf32>, vector<8x128xf32> -> vector<8x128xf32>
    %c0_4 = arith.constant 0 : index
    %c0_5 = arith.constant 0 : index
    %6 = vector.load %arg4[%c0_4, %c0_5] : memref<8x128xf32, #tpu.memory_space<vmem>>, vector<8x128xf32>
    %c0_6 = arith.constant 0 : index
    %c0_7 = arith.constant 0 : index
    %7 = vector.load %arg6[%c0_6, %c0_7] : memref<128x128xf32, #tpu.memory_space<vmem>>, vector<128x128xf32>
    %cst_8 = arith.constant dense<0.000000e+00> : vector<8x128xf32>
    %8 = tpu.matmul %6, %7, %cst_8 {dimension_numbers = #tpu.dot_dimension_numbers<[1], [1], [0], [0], [0, 0, 1, 0], [], []>} : vector<8x128xf32>, vector<128x128xf32>, vector<8x128xf32> -> vector<8x128xf32>
    %c0_9 = arith.constant 0 : index
    %c0_10 = arith.constant 0 : index
    %9 = vector.load %arg7[%c0_9, %c0_10] : memref<1x128xf32, #tpu.memory_space<vmem>>, vector<1x128xf32>
    %10 = vector.broadcast %9 : vector<1x128xf32> to vector<8x128xf32>
    %11 = arith.mulf %8, %10 : vector<8x128xf32>
    %12 = arith.addf %5, %11 : vector<8x128xf32>
    %c0_11 = arith.constant 0 : index
    %c0_12 = arith.constant 0 : index
    %13 = vector.load %arg9[%c0_11, %c0_12] : memref<8x128xf32, #tpu.memory_space<vmem>>, vector<8x128xf32>
    %14 = arith.addf %13, %12 : vector<8x128xf32>
    %c0_13 = arith.constant 0 : index
    %c0_14 = arith.constant 0 : index
    %15 = vector.load %arg9[%c0_13, %c0_14] : memref<8x128xf32, #tpu.memory_space<vmem>>, vector<8x128xf32>
    tpu.vector_store %arg9[%c0_13, %c0_14], %14 {strides = array<i32>} : memref<8x128xf32, #tpu.memory_space<vmem>>, vector<8x128xf32>,
    %c0_i32_15 = arith.constant 0 : i32
    %16 = arith.cmpi eq, %arg2, %c0_i32_15 : i32
    %17 = arith.extui %16 : i1 to i32
    %c0_i32_16 = arith.constant 0 : i32
    %18 = arith.cmpi ne, %17, %c0_i32_16 : i32
    scf.if %18 {
      %c0_17 = arith.constant 0 : index
      %c0_18 = arith.constant 0 : index
      %19 = vector.load %arg9[%c0_17, %c0_18] : memref<8x128xf32, #tpu.memory_space<vmem>>, vector<8x128xf32>
      %c0_19 = arith.constant 0 : index
      %c0_20 = arith.constant 0 : index
      %20 = vector.load %arg8[%c0_19, %c0_20] : memref<1x128xf32, #tpu.memory_space<vmem>>, vector<1x128xf32>
      %21 = vector.broadcast %20 : vector<1x128xf32> to vector<8x128xf32>
      %22 = arith.addf %19, %21 : vector<8x128xf32>
      %c0_21 = arith.constant 0 : index
      %c0_22 = arith.constant 0 : index
      %23 = vector.load %arg9[%c0_21, %c0_22] : memref<8x128xf32, #tpu.memory_space<vmem>>, vector<8x128xf32>
      tpu.vector_store %arg9[%c0_21, %c0_22], %22 {strides = array<i32>} : memref<8x128xf32, #tpu.memory_space<vmem>>, vector<8x128xf32>,
    } else {
    }
    return
  }
  func.func @transform_0(%arg0: i32, %arg1: i32, %arg2: i32) -> (i32, i32) {
    %c0_i32 = arith.constant 0 : i32
    return %arg0, %arg2 : i32, i32
  }
  func.func @transform_1(%arg0: i32, %arg1: i32, %arg2: i32) -> (i32, i32) {
    %c0_i32 = arith.constant 0 : i32
    return %arg0, %arg2 : i32, i32
  }
  func.func @transform_2(%arg0: i32, %arg1: i32, %arg2: i32) -> (i32, i32) {
    %c0_i32 = arith.constant 0 : i32
    return %arg1, %arg2 : i32, i32
  }
  func.func @transform_3(%arg0: i32, %arg1: i32, %arg2: i32) -> (i32, i32) {
    %c0_i32 = arith.constant 0 : i32
    return %arg1, %arg2 : i32, i32
  }
  func.func @transform_4(%arg0: i32, %arg1: i32, %arg2: i32) -> (i32, i32) {
    %c0_i32 = arith.constant 0 : i32
    %c0_i32_0 = arith.constant 0 : i32
    return %c0_i32, %arg1 : i32, i32
  }
  func.func @transform_5(%arg0: i32, %arg1: i32, %arg2: i32) -> (i32, i32) {
    %c0_i32 = arith.constant 0 : i32
    %c0_i32_0 = arith.constant 0 : i32
    return %c0_i32, %arg1 : i32, i32
  }
  func.func @transform_6(%arg0: i32, %arg1: i32, %arg2: i32) -> (i32, i32) {
    %c0_i32 = arith.constant 0 : i32
    return %arg0, %arg1 : i32, i32
  }
}

</mosaic_0001>

<llo_original>
// kernel: tpu_custom_call.1
$region0: #{tpu_custom_call.1}
  #allocation0 [shape = 'u32[]', space=smem, size = 0x4, offset = 0x4, fixed_abs, tag = 'smem constant byte address 0x4 - core index']
  #allocation1 [shape = 'u32[144,128]{1,0:T(1,128)}', space=vmem, size = 0x12000, scoped, tag = 'internal scratch']
  %s0 = inlined_call_operand.hbm [shape: f32[8,128], index: 0, kind: input, shape index: {}]
  %s1 = inlined_call_operand.hbm [shape: f32[8,128], index: 1, kind: input, shape index: {}]
  %s2 = inlined_call_operand.hbm [shape: f32[128,128], index: 2, kind: input, shape index: {}]
  %s3 = inlined_call_operand.hbm [shape: f32[128,128], index: 3, kind: input, shape index: {}]
  %s4 = inlined_call_operand.vmem [shape: f32[1,128], index: 4, kind: input, shape index: {}]
  %s5 = inlined_call_operand.vmem [shape: f32[1,128], index: 5, kind: input, shape index: {}]
  %s6 = inlined_call_operand.hbm [shape: f32[8,128], index: 6, kind: output, shape index: {}]
  %s7 = sld [smem:[#allocation0]]
  $region58: #{tpu_custom_call.1} parent=0
    _
  %s9 = ssub.s32 1, %s7
  %s10 = scalar_select 0, %s9, %s7
  $region1: #{tpu_custom_call.1} parent=0
    #allocation2 [shape = 'u8[4096]{0}', space=vmem, size = 0x1000, scoped, tag = 'input window, operand 0, single buffered']
    #allocation3 [shape = 's32[1]{0}', space=sflag, size = 0x4, scoped, tag = 'scoped memory for tpu_custom_call.1']
    #allocation4 [shape = 's32[1]{0}', space=sflag, size = 0x4, scoped, tag = 'scoped memory for tpu_custom_call.1']
    #allocation5 [shape = 'u8[4096]{0}', space=vmem, size = 0x1000, scoped, tag = 'input window, operand 1, single buffered']
    #allocation6 [shape = 's32[1]{0}', space=sflag, size = 0x4, scoped, tag = 'scoped memory for tpu_custom_call.1']
    #allocation7 [shape = 'u8[65536]{0}', space=vmem, size = 0x10000, scoped, tag = 'input window, operand 2, single buffered']
    #allocation8 [shape = 'u8[65536]{0}', space=vmem, size = 0x10000, scoped, tag = 'input window, operand 3, single buffered']
    #allocation9 [shape = 's32[1]{0}', space=sflag, size = 0x4, scoped, tag = 'scoped memory for tpu_custom_call.1']
    #allocation10 [shape = 'u8[4096]{0}', space=vmem, size = 0x1000, scoped, tag = 'output window, operand 0, single buffered']
    %11 = vsyncpa [#allocation3], 0
    %12 = vsyncpa [#allocation6], 0
    %13 = vsyncpa [#allocation9], 0
    %14 = vsyncpa [#allocation4], 0
    // Predicated region
    $region2: #{tpu_custom_call.1} parent=1 // pred_check
      _
    $region3: #{tpu_custom_call.1} parent=1 // pred_check_branch
      %16 = sbr.rel (0) target = $region5
    $region4: #{tpu_custom_call.1} parent=1 // pred_region
      %s18 = ssub.s32 128, 128
      %19 = vsyncadd [#allocation3], %s18
      %s21 = sshll.u32 [#allocation2], 4
      %s22 = int_to_ptr.vmem [resolvable:$true] %s21
      %24 = dma.hbm_to_vmem [thread:$0]  %s0, 128, %s22, [#allocation3]
    $region5: #{tpu_custom_call.1} parent=1 // pred_fallthru
      _
    // Predicated region
    $region6: #{tpu_custom_call.1} parent=1 // pred_check
      _
    $region7: #{tpu_custom_call.1} parent=1 // pred_check_branch
      %26 = sbr.rel (0) target = $region9
    $region8: #{tpu_custom_call.1} parent=1 // pred_region
      %s28 = ssub.s32 128, 128
      %29 = vsyncadd [#allocation6], %s28
      %s31 = sshll.u32 [#allocation5], 4
      %s32 = int_to_ptr.vmem [resolvable:$true] %s31
      %34 = dma.hbm_to_vmem [thread:$0]  %s1, 128, %s32, [#allocation6]
    $region9: #{tpu_custom_call.1} parent=1 // pred_fallthru
      _
    // Predicated region
    $region10: #{tpu_custom_call.1} parent=1 // pred_check
      _
    $region11: #{tpu_custom_call.1} parent=1 // pred_check_branch
      %36 = sbr.rel (0) target = $region13
    $region12: #{tpu_custom_call.1} parent=1 // pred_region
      %s38 = ssub.s32 2048, 2048
      %39 = vsyncadd [#allocation6], %s38
      %s40 = sshll.u32 [#allocation7], 4
      %s41 = int_to_ptr.vmem [resolvable:$true] %s40
      %46 = dma.hbm_to_vmem [thread:$0]  %s2, 2048, %s41, [#allocation6], 128, 128, 8
    $region13: #{tpu_custom_call.1} parent=1 // pred_fallthru
      _
    // Predicated region
    $region14: #{tpu_custom_call.1} parent=1 // pred_check
      _
    $region15: #{tpu_custom_call.1} parent=1 // pred_check_branch
      %48 = sbr.rel (0) target = $region17
    $region16: #{tpu_custom_call.1} parent=1 // pred_region
      %s50 = ssub.s32 2048, 2048
      %51 = vsyncadd [#allocation9], %s50
      %s52 = sshll.u32 [#allocation8], 4
      %s53 = int_to_ptr.vmem [resolvable:$true] %s52
      %58 = dma.hbm_to_vmem [thread:$0]  %s3, 2048, %s53, [#allocation9], 128, 128, 8
    $region17: #{tpu_custom_call.1} parent=1 // pred_fallthru
      _
    // Predicated region
    $region18: #{tpu_custom_call.1} parent=1 // pred_check
      _
    $region19: #{tpu_custom_call.1} parent=1 // pred_check_branch
      %60 = sbr.rel (0) target = $region21
    $region20: #{tpu_custom_call.1} parent=1 // pred_region
      _
    $region21: #{tpu_custom_call.1} parent=1 // pred_fallthru
      _
    // Predicated region
    $region22: #{tpu_custom_call.1} parent=1 // pred_check
      _
    $region23: #{tpu_custom_call.1} parent=1 // pred_check_branch
      %62 = sbr.rel (0) target = $region25
    $region24: #{tpu_custom_call.1} parent=1 // pred_region
      _
    $region25: #{tpu_custom_call.1} parent=1 // pred_fallthru
      _
    // Predicated region
    $region26: #{tpu_custom_call.1} parent=1 // pred_check
      _
    $region27: #{tpu_custom_call.1} parent=1 // pred_check_branch
      %64 = sbr.rel (0) target = $region29
    $region28: #{tpu_custom_call.1} parent=1 // pred_region
      %65 = dma.done [#allocation3], 128
    $region29: #{tpu_custom_call.1} parent=1 // pred_fallthru
      _
    // Predicated region
    $region30: #{tpu_custom_call.1} parent=1 // pred_check
      _
    $region31: #{tpu_custom_call.1} parent=1 // pred_check_branch
      %67 = sbr.rel (0) target = $region33
    $region32: #{tpu_custom_call.1} parent=1 // pred_region
      %68 = dma.done [#allocation6], 128
    $region33: #{tpu_custom_call.1} parent=1 // pred_fallthru
      _
    // Predicated region
    $region34: #{tpu_custom_call.1} parent=1 // pred_check
      _
    $region35: #{tpu_custom_call.1} parent=1 // pred_check_branch
      %70 = sbr.rel (0) target = $region37
    $region36: #{tpu_custom_call.1} parent=1 // pred_region
      %71 = dma.done [#allocation6], 2048
    $region37: #{tpu_custom_call.1} parent=1 // pred_fallthru
      _
    // Predicated region
    $region38: #{tpu_custom_call.1} parent=1 // pred_check
      _
    $region39: #{tpu_custom_call.1} parent=1 // pred_check_branch
      %73 = sbr.rel (0) target = $region41
    $region40: #{tpu_custom_call.1} parent=1 // pred_region
      %74 = dma.done [#allocation9], 2048
    $region41: #{tpu_custom_call.1} parent=1 // pred_fallthru
      _
    %p75 = scmp.eq.s32.totalorder 0, 0
    // Predicated region
    $region42: #{tpu_custom_call.1} parent=1 // pred_check
      %p76 = pneg %p75
    $region43: #{tpu_custom_call.1} parent=1 // pred_check_branch
      %78 = sbr.rel (%p76) target = $region45
    $region44: #{tpu_custom_call.1} parent=1 // pred_region
      %79 = vst [vmem:[#allocation10] sm:$0xff] 0.0
    $region45: #{tpu_custom_call.1} parent=1 // pred_fallthru
      _
    %v80 = vld [vmem:[#allocation2] sm:$0xff]
    %v81 = vld [vmem:[#allocation7] sm:$0xff]
    %v82 = vld [vmem:[#allocation7 + $0x8] sm:$0xff]
    %v83 = vld [vmem:[#allocation7 + $0x10] sm:$0xff]
    %v84 = vld [vmem:[#allocation7 + $0x18] sm:$0xff]
    %v85 = vld [vmem:[#allocation7 + $0x20] sm:$0xff]
    %v86 = vld [vmem:[#allocation7 + $0x28] sm:$0xff]
    %v87 = vld [vmem:[#allocation7 + $0x30] sm:$0xff]
    %v88 = vld [vmem:[#allocation7 + $0x38] sm:$0xff]
    %v89 = vld [vmem:[#allocation7 + $0x40] sm:$0xff]
    %v90 = vld [vmem:[#allocation7 + $0x48] sm:$0xff]
    %v91 = vld [vmem:[#allocation7 + $0x50] sm:$0xff]
    %v92 = vld [vmem:[#allocation7 + $0x58] sm:$0xff]
    %v93 = vld [vmem:[#allocation7 + $0x60] sm:$0xff]
    %v94 = vld [vmem:[#allocation7 + $0x68] sm:$0xff]
    %v95 = vld [vmem:[#allocation7 + $0x70] sm:$0xff]
    %v96 = vld [vmem:[#allocation7 + $0x78] sm:$0xff]
    %v97 = vld [vmem:[#allocation5] sm:$0xff]
    %v98 = vld [vmem:[#allocation8] sm:$0xff]
    %v99 = vld [vmem:[#allocation8 + $0x8] sm:$0xff]
    %v100 = vld [vmem:[#allocation8 + $0x10] sm:$0xff]
    %v101 = vld [vmem:[#allocation8 + $0x18] sm:$0xff]
    %v102 = vld [vmem:[#allocation8 + $0x20] sm:$0xff]
    %v103 = vld [vmem:[#allocation8 + $0x28] sm:$0xff]
    %v104 = vld [vmem:[#allocation8 + $0x30] sm:$0xff]
    %v105 = vld [vmem:[#allocation8 + $0x38] sm:$0xff]
    %v106 = vld [vmem:[#allocation8 + $0x40] sm:$0xff]
    %v107 = vld [vmem:[#allocation8 + $0x48] sm:$0xff]
    %v108 = vld [vmem:[#allocation8 + $0x50] sm:$0xff]
    %v109 = vld [vmem:[#allocation8 + $0x58] sm:$0xff]
    %v110 = vld [vmem:[#allocation8 + $0x60] sm:$0xff]
    %v111 = vld [vmem:[#allocation8 + $0x68] sm:$0xff]
    %v112 = vld [vmem:[#allocation8 + $0x70] sm:$0xff]
    %v113 = vld [vmem:[#allocation8 + $0x78] sm:$0xff]
    %114 = vmatprep.subr.mxu0 0.0
    %115 = vmatpush1.xpose.msra.mxu0 %v98
    %116 = vmatprep.subr.mxu0 0.0
    %117 = vmatpush1.xpose.msra.mxu0 %v99
    %118 = vmatprep.subr.mxu0 0.0
    %119 = vmatpush1.xpose.msra.mxu0 %v100
    %120 = vmatprep.subr.mxu0 0.0
    %121 = vmatpush1.xpose.msra.mxu0 %v101
    %122 = vmatprep.subr.mxu0 0.0
    %123 = vmatpush1.xpose.msra.mxu0 %v102
    %124 = vmatprep.subr.mxu0 0.0
    %125 = vmatpush1.xpose.msra.mxu0 %v103
    %126 = vmatprep.subr.mxu0 0.0
    %127 = vmatpush1.xpose.msra.mxu0 %v104
    %128 = vmatprep.subr.mxu0 0.0
    %129 = vmatpush1.xpose.msra.mxu0 %v105
    %130 = vmatprep.subr.mxu0 0.0
    %131 = vmatpush1.xpose.msra.mxu0 %v106
    %132 = vmatprep.subr.mxu0 0.0
    %133 = vmatpush1.xpose.msra.mxu0 %v107
    %134 = vmatprep.subr.mxu0 0.0
    %135 = vmatpush1.xpose.msra.mxu0 %v108
    %136 = vmatprep.subr.mxu0 0.0
    %137 = vmatpush1.xpose.msra.mxu0 %v109
    %138 = vmatprep.subr.mxu0 0.0
    %139 = vmatpush1.xpose.msra.mxu0 %v110
    %140 = vmatprep.subr.mxu0 0.0
    %141 = vmatpush1.xpose.msra.mxu0 %v111
    %142 = vmatprep.subr.mxu0 0.0
    %143 = vmatpush1.xpose.msra.mxu0 %v112
    %144 = vmatprep.subr.mxu0 0.0
    %145 = vmatpush1.xpose.msra.mxu0 %v113
    %146 = vmatprep.subr.mxu0 0.0
    %147 = vmatpush1.xpose.msra.mxu0 0.0
    %148 = vmatprep.subr.mxu0 0.0
    %149 = vmatpush1.xpose.msra.mxu0 0.0
    %150 = vmatprep.subr.mxu0 0.0
    %151 = vmatpush1.xpose.msra.mxu0 0.0
    %152 = vmatprep.subr.mxu0 0.0
    %153 = vmatpush1.xpose.msra.mxu0 0.0
    %154 = vmatprep.subr.mxu0 0.0
    %155 = vmatpush1.xpose.msra.mxu0 0.0
    %156 = vmatprep.subr.mxu0 0.0
    %157 = vmatpush1.xpose.msra.mxu0 0.0
    %158 = vmatprep.subr.mxu0 0.0
    %159 = vmatpush1.xpose.msra.mxu0 0.0
    %160 = vmatprep.subr.mxu0 0.0
    %161 = vmatpush1.xpose.msra.mxu0 0.0
    %162 = vmatprep.subr.mxu0 0.0
    %163 = vmatpush1.xpose.msra.mxu0 0.0
    %164 = vmatprep.subr.mxu0 0.0
    %165 = vmatpush1.xpose.msra.mxu0 0.0
    %166 = vmatprep.subr.mxu0 0.0
    %167 = vmatpush1.xpose.msra.mxu0 0.0
    %168 = vmatprep.subr.mxu0 0.0
    %169 = vmatpush1.xpose.msra.mxu0 0.0
    %170 = vmatprep.subr.mxu0 0.0
    %171 = vmatpush1.xpose.msra.mxu0 0.0
    %172 = vmatprep.subr.mxu0 0.0
    %173 = vmatpush1.xpose.msra.mxu0 0.0
    %174 = vmatprep.subr.mxu0 0.0
    %175 = vmatpush1.xpose.msra.mxu0 0.0
    %176 = vmatprep.subr.mxu0 0.0
    %177 = vmatpush1.xpose.msra.mxu0 0.0
    %178 = vmatprep.mubr.f32.mxu0 0.0
    %179 = vmatmul.mubr.f32.gmra.mrb[0].mxu0 %v97
    %v180 = vpop.f32.mrb[0].mxu0
    %v181 = vadd.f32 0.0, %v180
    %v182 = vpop.f32.mrb[0].mxu0
    %183 = vdwg.mxu0
    %v184 = vld [vmem:[%s4] sm:$0x1]
    %v186 = vlaneseq
    %v187 = vshrl.u32 %v186, 7
    %v188 = vsub.s32 0, %v187
    %v189 = vrot.slane %v184, %v188
    %v191 = vmul.f32 %v181, %v189
    %192 = vmatprep.subr.mxu0 0.0
    %193 = vmatpush1.xpose.msra.mxu0 %v81
    %194 = vmatprep.subr.mxu0 0.0
    %195 = vmatpush1.xpose.msra.mxu0 %v82
    %196 = vmatprep.subr.mxu0 0.0
    %197 = vmatpush1.xpose.msra.mxu0 %v83
    %198 = vmatprep.subr.mxu0 0.0
    %199 = vmatpush1.xpose.msra.mxu0 %v84
    %200 = vmatprep.subr.mxu0 0.0
    %201 = vmatpush1.xpose.msra.mxu0 %v85
    %202 = vmatprep.subr.mxu0 0.0
    %203 = vmatpush1.xpose.msra.mxu0 %v86
    %204 = vmatprep.subr.mxu0 0.0
    %205 = vmatpush1.xpose.msra.mxu0 %v87
    %206 = vmatprep.subr.mxu0 0.0
    %207 = vmatpush1.xpose.msra.mxu0 %v88
    %208 = vmatprep.subr.mxu0 0.0
    %209 = vmatpush1.xpose.msra.mxu0 %v89
    %210 = vmatprep.subr.mxu0 0.0
    %211 = vmatpush1.xpose.msra.mxu0 %v90
    %212 = vmatprep.subr.mxu0 0.0
    %213 = vmatpush1.xpose.msra.mxu0 %v91
    %214 = vmatprep.subr.mxu0 0.0
    %215 = vmatpush1.xpose.msra.mxu0 %v92
    %216 = vmatprep.subr.mxu0 0.0
    %217 = vmatpush1.xpose.msra.mxu0 %v93
    %218 = vmatprep.subr.mxu0 0.0
    %219 = vmatpush1.xpose.msra.mxu0 %v94
    %220 = vmatprep.subr.mxu0 0.0
    %221 = vmatpush1.xpose.msra.mxu0 %v95
    %222 = vmatprep.subr.mxu0 0.0
    %223 = vmatpush1.xpose.msra.mxu0 %v96
    %224 = vmatprep.subr.mxu0 0.0
    %225 = vmatpush1.xpose.msra.mxu0 0.0
    %226 = vmatprep.subr.mxu0 0.0
    %227 = vmatpush1.xpose.msra.mxu0 0.0
    %228 = vmatprep.subr.mxu0 0.0
    %229 = vmatpush1.xpose.msra.mxu0 0.0
    %230 = vmatprep.subr.mxu0 0.0
    %231 = vmatpush1.xpose.msra.mxu0 0.0
    %232 = vmatprep.subr.mxu0 0.0
    %233 = vmatpush1.xpose.msra.mxu0 0.0
    %234 = vmatprep.subr.mxu0 0.0
    %235 = vmatpush1.xpose.msra.mxu0 0.0
    %236 = vmatprep.subr.mxu0 0.0
    %237 = vmatpush1.xpose.msra.mxu0 0.0
    %238 = vmatprep.subr.mxu0 0.0
    %239 = vmatpush1.xpose.msra.mxu0 0.0
    %240 = vmatprep.subr.mxu0 0.0
    %241 = vmatpush1.xpose.msra.mxu0 0.0
    %242 = vmatprep.subr.mxu0 0.0
    %243 = vmatpush1.xpose.msra.mxu0 0.0
    %244 = vmatprep.subr.mxu0 0.0
    %245 = vmatpush1.xpose.msra.mxu0 0.0
    %246 = vmatprep.subr.mxu0 0.0
    %247 = vmatpush1.xpose.msra.mxu0 0.0
    %248 = vmatprep.subr.mxu0 0.0
    %249 = vmatpush1.xpose.msra.mxu0 0.0
    %250 = vmatprep.subr.mxu0 0.0
    %251 = vmatpush1.xpose.msra.mxu0 0.0
    %252 = vmatprep.subr.mxu0 0.0
    %253 = vmatpush1.xpose.msra.mxu0 0.0
    %254 = vmatprep.subr.mxu0 0.0
    %255 = vmatpush1.xpose.msra.mxu0 0.0
    %256 = vmatprep.mubr.f32.mxu0 0.0
    %257 = vmatmul.mubr.f32.gmra.mrb[0].mxu0 %v80
    %v258 = vpop.f32.mrb[0].mxu0
    %v259 = vadd.f32 %v191, %v258
    %v260 = vpop.f32.mrb[0].mxu0
    %261 = vdwg.mxu0
    %v262 = vld [vmem:[#allocation10] sm:$0xff]
    %v263 = vadd.f32 %v262, %v259
    %264 = vst [vmem:[#allocation10] sm:$0xff] %v263
    // Predicated region
    $region46: #{tpu_custom_call.1} parent=1 // pred_check
      %p265 = pneg %p75
    $region47: #{tpu_custom_call.1} parent=1 // pred_check_branch
      %267 = sbr.rel (%p265) target = $region49
    $region48: #{tpu_custom_call.1} parent=1 // pred_region
      %v268 = vld [vmem:[#allocation10] sm:$0xff]
      %v269 = vld [vmem:[%s5] sm:$0x1]
      %v271 = vlaneseq
      %v272 = vshrl.u32 %v271, 7
      %v273 = vsub.s32 0, %v272
      %v274 = vrot.slane %v269, %v273
      %v276 = vadd.f32 %v268, %v274
      %277 = vst [vmem:[#allocation10] sm:$0xff] %v276
    $region49: #{tpu_custom_call.1} parent=1 // pred_fallthru
      _
    // Predicated region
    $region50: #{tpu_custom_call.1} parent=1 // pred_check
      _
    $region51: #{tpu_custom_call.1} parent=1 // pred_check_branch
      %279 = sbr.rel (0) target = $region53
    $region52: #{tpu_custom_call.1} parent=1 // pred_region
      %s281 = ssub.s32 128, 128
      %282 = vsyncadd [#allocation4], %s281
      %s284 = sshll.u32 [#allocation10], 4
      %s285 = int_to_ptr.vmem [resolvable:$true] %s284
      %287 = dma.vmem_to_hbm [thread:$0]  %s285, 128, %s6, [#allocation4]
    $region53: #{tpu_custom_call.1} parent=1 // pred_fallthru
      _
    // Predicated region
    $region54: #{tpu_custom_call.1} parent=1 // pred_check
      _
    $region55: #{tpu_custom_call.1} parent=1 // pred_check_branch
      %289 = sbr.rel (0) target = $region57
    $region56: #{tpu_custom_call.1} parent=1 // pred_region
      %290 = dma.done [#allocation4], 128
    $region57: #{tpu_custom_call.1} parent=1 // pred_fallthru
      _
    %291 = vsyncpa [#allocation3], 1
    %292 = vsyncpa [#allocation6], 1
    %293 = vsyncpa [#allocation9], 1
    %294 = vsyncpa [#allocation4], 1

</llo_original>
